<compile_context>
chip_gen: v5e
topology: v5e:2x2
jax: 0.10.0
libtpu: 0.0.40
codegen_flags: <defaults>
</compile_context>

<pallas_src>
import jax
import jax.numpy as jnp
from jax.experimental import pallas as pl
from jax.experimental.pallas import tpu as pltpu


def _mf_kernel(uid_ref, iid_ref, utab_t_ref, itab_t_ref, out_ref):
    # uid_ref / iid_ref : VMEM int32 (1, TB)   batch tile of ids
    # utab_t_ref        : VMEM bf16 (F, U)     transposed user table (resident)
    # itab_t_ref        : VMEM bf16 (F, I)     transposed item table (resident)
    # out_ref           : VMEM f32  (1, TB)    lane-dense prediction tile
    uids = uid_ref[...]                                   # (1, TB) int32
    iids = iid_ref[...]                                   # (1, TB) int32
    U = utab_t_ref.shape[1]
    I = itab_t_ref.shape[1]
    TB = uids.shape[1]

    # Vectorized one-hot gather on the MXU: onehot[v, b] = (ids[b] == v).
    # NOTE: an out-of-range id yields an all-zero one-hot column and therefore
    # a 0.0 prediction (nn.Embedding would raise instead).
    u_oh = (jax.lax.broadcasted_iota(jnp.int32, (U, TB), 0) == uids
            ).astype(utab_t_ref.dtype)                    # (U, TB) bf16 0/1
    i_oh = (jax.lax.broadcasted_iota(jnp.int32, (I, TB), 0) == iids
            ).astype(itab_t_ref.dtype)                    # (I, TB) bf16 0/1

    # Native bf16 MXU matmuls, f32 accumulation -> exact row selection.
    u_rows = jnp.dot(utab_t_ref[...], u_oh,
                     preferred_element_type=jnp.float32)  # (F, TB) f32
    i_rows = jnp.dot(itab_t_ref[...], i_oh,
                     preferred_element_type=jnp.float32)  # (F, TB) f32

    # Elementwise product with batch on lanes (full 128-lane VPU utilization),
    # then a sublane reduction over the factor dim -> lane-dense (1, TB) row.
    out_ref[...] = jnp.sum(u_rows * i_rows, axis=0, keepdims=True)


def prepare_mf_tables(user_table, item_table):
    """One-time conversion of the embedding tables to the kernel layout.

    Returns transposed (F, vocab) bfloat16 copies.  Do this once at parameter
    load/update time, NOT per forward call -- a per-call transpose/upcast is a
    full extra HBM pass over each table.
    """
    return (jnp.asarray(user_table, jnp.bfloat16).T,      # (F, U)
            jnp.asarray(item_table, jnp.bfloat16).T)      # (F, I)


def _vmem_limit_bytes():
    # Generation-aware scoped-VMEM cap: ~75% of this chip's per-core VMEM
    # (128 MiB on v5e/v6e, 64 MiB on v7x).  Fall back to the compiler default
    # if the query is unavailable.
    try:
        return int(0.75 * pltpu.get_tpu_info().vmem_capacity_bytes)
    except Exception:
        return None


def mf_bce_forward(user_ids, item_ids, utab_t, itab_t, *, tb=512,
                   single_buffer_tables=True):
    """Pallas MF_BCE.forward.  Tables must come from prepare_mf_tables().

    Returns (B,) float32 predictions.
    """
    B = user_ids.shape[0]
    F, U = utab_t.shape
    _, I = itab_t.shape

    # Large tiles amortize the ~0.35 us/step pipeline overhead, but keep >= 2
    # grid steps when the batch allows so the "parallel" batch axis can shard
    # across both TensorCores on v7x (single-TC v5e/v6e are unaffected).
    tb = max(128, min(tb, 128 * pl.cdiv(B, 2 * 128)))
    n_tiles = pl.cdiv(B, tb)
    b_pad = n_tiles * tb

    # Pad the batch with id 0 (always in range); padded outputs sliced off.
    uid = jnp.pad(user_ids.astype(jnp.int32), (0, b_pad - B)).reshape(1, b_pad)
    iid = jnp.pad(item_ids.astype(jnp.int32), (0, b_pad - B)).reshape(1, b_pad)

    # The tables' index_map is constant (0, 0): a second pipeline buffer is
    # pure VMEM waste, so request a single buffer.
    table_mode = pl.Buffered(1) if single_buffer_tables else None

    out = pl.pallas_call(
        _mf_kernel,
        out_shape=jax.ShapeDtypeStruct((1, b_pad), jnp.float32),
        grid_spec=pltpu.PrefetchScalarGridSpec(
            num_scalar_prefetch=0,
            grid=(n_tiles,),
            in_specs=[
                pl.BlockSpec((1, tb), lambda g: (0, g)),                # user ids
                pl.BlockSpec((1, tb), lambda g: (0, g)),                # item ids
                pl.BlockSpec((F, U), lambda g: (0, 0),
                             pipeline_mode=table_mode),                 # user table (T)
                pl.BlockSpec((F, I), lambda g: (0, 0),
                             pipeline_mode=table_mode),                 # item table (T)
            ],
            out_specs=pl.BlockSpec((1, tb), lambda g: (0, g)),
        ),
        compiler_params=pltpu.CompilerParams(
            dimension_semantics=("parallel",),
            vmem_limit_bytes=_vmem_limit_bytes(),
        ),
    )(uid, iid, utab_t, itab_t)
    return out[0, :B]                                      # (B,)


if __name__ == "__main__":
    # Module hyper-parameters (synthetic, small).
    user_num, item_num, factor_num = 64, 48, 32
    batch = 300          # NOT a multiple of the tile -> exercises padding

    key = jax.random.PRNGKey(0)
    k_u, k_i, k_uid, k_iid = jax.random.split(key, 4)

    # nn.init.normal_(..., std=0.01) for both embedding tables (f32 masters,
    # as in the PyTorch module).
    user_table = (0.01 * jax.random.normal(k_u, (user_num, factor_num))
                  ).astype(jnp.float32)
    item_table = (0.01 * jax.random.normal(k_i, (item_num, factor_num))
                  ).astype(jnp.float32)

    user_ids = jax.random.randint(k_uid, (batch,), 0, user_num, dtype=jnp.int32)
    item_ids = jax.random.randint(k_iid, (batch,), 0, item_num, dtype=jnp.int32)

    # One-time layout/dtype conversion to the kernel-resident table layout.
    utab_t, itab_t = prepare_mf_tables(user_table, item_table)

    try:
        pred = jax.block_until_ready(
            mf_bce_forward(user_ids, item_ids, utab_t, itab_t, tb=512))
    except Exception:
        # TODO(synk): pipeline_mode=pl.Buffered(1) not accepted by this jax
        # build's pallas_call pipeline; fall back to default double-buffering
        # of the (tiny) resident tables.
        pred = jax.block_until_ready(
            mf_bce_forward(user_ids, item_ids, utab_t, itab_t, tb=512,
                           single_buffer_tables=False))

    # Reference with the same deliberate bf16 storage of the embeddings,
    # gathered/multiplied/reduced in f32 -- the kernel's exact intended math.
    utab_q = utab_t.T.astype(jnp.float32)   # (U, F) bf16-rounded values
    itab_q = itab_t.T.astype(jnp.float32)   # (I, F)
    ref_q = jnp.sum(utab_q[user_ids] * itab_q[item_ids], axis=-1)

    # Full-precision module reference: looser bound covering only the bf16
    # storage quantization of the embedding values.
    ref_f32 = jnp.sum(user_table[user_ids] * item_table[item_ids], axis=-1)

    assert pred.shape == (batch,)
    assert jnp.allclose(pred, ref_q, atol=1e-6, rtol=1e-3), (
        float(jnp.max(jnp.abs(pred - ref_q))))
    assert jnp.allclose(pred, ref_f32, atol=2e-4, rtol=5e-2), (
        float(jnp.max(jnp.abs(pred - ref_f32))))
    print("KERNEL_OK")
</pallas_src>

<mosaic_0001>
module attributes {stable_mosaic.version = 11 : i64} {
  func.func @_mf_kernel(%arg0: i32, %arg1: memref<1x256xi32, #tpu.memory_space<vmem>>, %arg2: memref<1x256xi32, #tpu.memory_space<vmem>>, %arg3: memref<32x64xbf16, #tpu.memory_space<vmem>>, %arg4: memref<32x48xbf16, #tpu.memory_space<vmem>>, %arg5: memref<1x256xf32, #tpu.memory_space<vmem>>) attributes {dimension_semantics = [#tpu.dimension_semantics<parallel>], iteration_bounds = array<i64: 2>, scalar_prefetch = 0 : i64, scratch_operands = 0 : i64, tpu.core_type = #tpu.core_type<tc>, window_params = [{transform_indices = @transform_0, window_bounds = array<i64: 1, 256>}, {transform_indices = @transform_1, window_bounds = array<i64: 1, 256>}, {pipeline_mode = #tpu.pipeline_mode<synchronous>, transform_indices = @transform_2, window_bounds = array<i64: 32, 64>}, {pipeline_mode = #tpu.pipeline_mode<synchronous>, transform_indices = @transform_3, window_bounds = array<i64: 32, 48>}, {transform_indices = @transform_4, window_bounds = array<i64: 1, 256>}]} {
    %c0 = arith.constant 0 : index
    %c0_0 = arith.constant 0 : index
    %0 = vector.load %arg1[%c0, %c0_0] : memref<1x256xi32, #tpu.memory_space<vmem>>, vector<1x256xi32>
    %c0_1 = arith.constant 0 : index
    %c0_2 = arith.constant 0 : index
    %1 = vector.load %arg2[%c0_1, %c0_2] : memref<1x256xi32, #tpu.memory_space<vmem>>, vector<1x256xi32>
    %2 = tpu.iota {dimensions = array<i32: 0>} : vector<64x256xi32>
    %3 = vector.broadcast %0 : vector<1x256xi32> to vector<64x256xi32>
    %4 = arith.cmpi eq, %2, %3 : vector<64x256xi32>
    %5 = arith.extui %4 : vector<64x256xi1> to vector<64x256xi32>
    %6 = arith.sitofp %5 : vector<64x256xi32> to vector<64x256xf32>
    %7 = arith.truncf %6 : vector<64x256xf32> to vector<64x256xbf16>
    %8 = tpu.iota {dimensions = array<i32: 0>} : vector<48x256xi32>
    %9 = vector.broadcast %1 : vector<1x256xi32> to vector<48x256xi32>
    %10 = arith.cmpi eq, %8, %9 : vector<48x256xi32>
    %11 = arith.extui %10 : vector<48x256xi1> to vector<48x256xi32>
    %12 = arith.sitofp %11 : vector<48x256xi32> to vector<48x256xf32>
    %13 = arith.truncf %12 : vector<48x256xf32> to vector<48x256xbf16>
    %c0_3 = arith.constant 0 : index
    %c0_4 = arith.constant 0 : index
    %14 = vector.load %arg3[%c0_3, %c0_4] : memref<32x64xbf16, #tpu.memory_space<vmem>>, vector<32x64xbf16>
    %cst = arith.constant dense<0.000000e+00> : vector<32x256xf32>
    %15 = tpu.matmul %14, %7, %cst {dimension_numbers = #tpu.dot_dimension_numbers<[1], [0], [0], [1], [0, 0, 1, 1], [], []>} : vector<32x64xbf16>, vector<64x256xbf16>, vector<32x256xf32> -> vector<32x256xf32>
    %c0_5 = arith.constant 0 : index
    %c0_6 = arith.constant 0 : index
    %16 = vector.load %arg4[%c0_5, %c0_6] : memref<32x48xbf16, #tpu.memory_space<vmem>>, vector<32x48xbf16>
    %cst_7 = arith.constant dense<0.000000e+00> : vector<32x256xf32>
    %17 = tpu.matmul %16, %13, %cst_7 {dimension_numbers = #tpu.dot_dimension_numbers<[1], [0], [0], [1], [0, 0, 1, 1], [], []>} : vector<32x48xbf16>, vector<48x256xbf16>, vector<32x256xf32> -> vector<32x256xf32>
    %18 = arith.mulf %15, %17 : vector<32x256xf32>
    %cst_8 = arith.constant dense<0.000000e+00> : vector<256xf32>
    %19 = vector.multi_reduction <add>, %18, %cst_8 [0] : vector<32x256xf32> to vector<256xf32>
    %20 = vector.shape_cast %19 : vector<256xf32> to vector<1x256xf32>
    %c0_9 = arith.constant 0 : index
    %c0_10 = arith.constant 0 : index
    %21 = vector.load %arg5[%c0_9, %c0_10] : memref<1x256xf32, #tpu.memory_space<vmem>>, vector<1x256xf32>
    tpu.vector_store %arg5[%c0_9, %c0_10], %20 {strides = array<i32>} : memref<1x256xf32, #tpu.memory_space<vmem>>, vector<1x256xf32>,
    return
  }
  func.func @transform_0(%arg0: i32) -> (i32, i32) {
    %c0_i32 = arith.constant 0 : i32
    %c0_i32_0 = arith.constant 0 : i32
    return %c0_i32, %arg0 : i32, i32
  }
  func.func @transform_1(%arg0: i32) -> (i32, i32) {
    %c0_i32 = arith.constant 0 : i32
    %c0_i32_0 = arith.constant 0 : i32
    return %c0_i32, %arg0 : i32, i32
  }
  func.func @transform_2(%arg0: i32) -> (i32, i32) {
    %c0_i32 = arith.constant 0 : i32
    %c0_i32_0 = arith.constant 0 : i32
    %c0_i32_1 = arith.constant 0 : i32
    return %c0_i32, %c0_i32_0 : i32, i32
  }
  func.func @transform_3(%arg0: i32) -> (i32, i32) {
    %c0_i32 = arith.constant 0 : i32
    %c0_i32_0 = arith.constant 0 : i32
    %c0_i32_1 = arith.constant 0 : i32
    return %c0_i32, %c0_i32_0 : i32, i32
  }
  func.func @transform_4(%arg0: i32) -> (i32, i32) {
    %c0_i32 = arith.constant 0 : i32
    %c0_i32_0 = arith.constant 0 : i32
    return %c0_i32, %arg0 : i32, i32
  }
}

module attributes {stable_mosaic.version = 11 : i64} {
  func.func @_mf_kernel(%arg0: i32, %arg1: memref<1x256xi32, #tpu.memory_space<vmem>>, %arg2: memref<1x256xi32, #tpu.memory_space<vmem>>, %arg3: memref<32x64xbf16, #tpu.memory_space<vmem>>, %arg4: memref<32x48xbf16, #tpu.memory_space<vmem>>, %arg5: memref<1x256xf32, #tpu.memory_space<vmem>>) attributes {dimension_semantics = [#tpu.dimension_semantics<parallel>], iteration_bounds = array<i64: 2>, scalar_prefetch = 0 : i64, scratch_operands = 0 : i64, tpu.core_type = #tpu.core_type<tc>, window_params = [{transform_indices = @transform_0, window_bounds = array<i64: 1, 256>}, {transform_indices = @transform_1, window_bounds = array<i64: 1, 256>}, {pipeline_mode = #tpu.pipeline_mode<synchronous>, transform_indices = @transform_2, window_bounds = array<i64: 32, 64>}, {pipeline_mode = #tpu.pipeline_mode<synchronous>, transform_indices = @transform_3, window_bounds = array<i64: 32, 48>}, {transform_indices = @transform_4, window_bounds = array<i64: 1, 256>}]} {
    %c0 = arith.constant 0 : index
    %c0_0 = arith.constant 0 : index
    %0 = vector.load %arg1[%c0, %c0_0] : memref<1x256xi32, #tpu.memory_space<vmem>>, vector<1x256xi32>
    %c0_1 = arith.constant 0 : index
    %c0_2 = arith.constant 0 : index
    %1 = vector.load %arg2[%c0_1, %c0_2] : memref<1x256xi32, #tpu.memory_space<vmem>>, vector<1x256xi32>
    %2 = tpu.iota {dimensions = array<i32: 0>} : vector<64x256xi32>
    %3 = vector.broadcast %0 : vector<1x256xi32> to vector<64x256xi32>
    %4 = arith.cmpi eq, %2, %3 : vector<64x256xi32>
    %5 = arith.extui %4 : vector<64x256xi1> to vector<64x256xi32>
    %6 = arith.sitofp %5 : vector<64x256xi32> to vector<64x256xf32>
    %7 = arith.truncf %6 : vector<64x256xf32> to vector<64x256xbf16>
    %8 = tpu.iota {dimensions = array<i32: 0>} : vector<48x256xi32>
    %9 = vector.broadcast %1 : vector<1x256xi32> to vector<48x256xi32>
    %10 = arith.cmpi eq, %8, %9 : vector<48x256xi32>
    %11 = arith.extui %10 : vector<48x256xi1> to vector<48x256xi32>
    %12 = arith.sitofp %11 : vector<48x256xi32> to vector<48x256xf32>
    %13 = arith.truncf %12 : vector<48x256xf32> to vector<48x256xbf16>
    %c0_3 = arith.constant 0 : index
    %c0_4 = arith.constant 0 : index
    %14 = vector.load %arg3[%c0_3, %c0_4] : memref<32x64xbf16, #tpu.memory_space<vmem>>, vector<32x64xbf16>
    %cst = arith.constant dense<0.000000e+00> : vector<32x256xf32>
    %15 = tpu.matmul %14, %7, %cst {dimension_numbers = #tpu.dot_dimension_numbers<[1], [0], [0], [1], [0, 0, 1, 1], [], []>} : vector<32x64xbf16>, vector<64x256xbf16>, vector<32x256xf32> -> vector<32x256xf32>
    %c0_5 = arith.constant 0 : index
    %c0_6 = arith.constant 0 : index
    %16 = vector.load %arg4[%c0_5, %c0_6] : memref<32x48xbf16, #tpu.memory_space<vmem>>, vector<32x48xbf16>
    %cst_7 = arith.constant dense<0.000000e+00> : vector<32x256xf32>
    %17 = tpu.matmul %16, %13, %cst_7 {dimension_numbers = #tpu.dot_dimension_numbers<[1], [0], [0], [1], [0, 0, 1, 1], [], []>} : vector<32x48xbf16>, vector<48x256xbf16>, vector<32x256xf32> -> vector<32x256xf32>
    %18 = arith.mulf %15, %17 : vector<32x256xf32>
    %cst_8 = arith.constant dense<0.000000e+00> : vector<256xf32>
    %19 = vector.multi_reduction <add>, %18, %cst_8 [0] : vector<32x256xf32> to vector<256xf32>
    %20 = vector.shape_cast %19 : vector<256xf32> to vector<1x256xf32>
    %c0_9 = arith.constant 0 : index
    %c0_10 = arith.constant 0 : index
    %21 = vector.load %arg5[%c0_9, %c0_10] : memref<1x256xf32, #tpu.memory_space<vmem>>, vector<1x256xf32>
    tpu.vector_store %arg5[%c0_9, %c0_10], %20 {strides = array<i32>} : memref<1x256xf32, #tpu.memory_space<vmem>>, vector<1x256xf32>,
    return
  }
  func.func @transform_0(%arg0: i32) -> (i32, i32) {
    %c0_i32 = arith.constant 0 : i32
    %c0_i32_0 = arith.constant 0 : i32
    return %c0_i32, %arg0 : i32, i32
  }
  func.func @transform_1(%arg0: i32) -> (i32, i32) {
    %c0_i32 = arith.constant 0 : i32
    %c0_i32_0 = arith.constant 0 : i32
    return %c0_i32, %arg0 : i32, i32
  }
  func.func @transform_2(%arg0: i32) -> (i32, i32) {
    %c0_i32 = arith.constant 0 : i32
    %c0_i32_0 = arith.constant 0 : i32
    %c0_i32_1 = arith.constant 0 : i32
    return %c0_i32, %c0_i32_0 : i32, i32
  }
  func.func @transform_3(%arg0: i32) -> (i32, i32) {
    %c0_i32 = arith.constant 0 : i32
    %c0_i32_0 = arith.constant 0 : i32
    %c0_i32_1 = arith.constant 0 : i32
    return %c0_i32, %c0_i32_0 : i32, i32
  }
  func.func @transform_4(%arg0: i32) -> (i32, i32) {
    %c0_i32 = arith.constant 0 : i32
    %c0_i32_0 = arith.constant 0 : i32
    return %c0_i32, %arg0 : i32, i32
  }
}

</mosaic_0001>

<llo_original>
// kernel: tpu_custom_call.1
$region0: #{tpu_custom_call.1}
  #allocation0 [shape = 'u32[]', space=smem, size = 0x4, offset = 0x4, fixed_abs, tag = 'smem constant byte address 0x4 - core index']
  #allocation1 [shape = 'u32[72,128]{1,0:T(1,128)}', space=vmem, size = 0x9000, scoped, tag = 'internal scratch']
  %s0 = inlined_call_operand.hbm [shape: s32[1,512], index: 0, kind: input, shape index: {}]
  %s1 = inlined_call_operand.hbm [shape: s32[1,512], index: 1, kind: input, shape index: {}]
  %s2 = inlined_call_operand.hbm [shape: bf16[32,64], index: 2, kind: input, shape index: {}]
  %s3 = inlined_call_operand.hbm [shape: bf16[32,48], index: 3, kind: input, shape index: {}]
  %s4 = inlined_call_operand.hbm [shape: f32[1,512], index: 4, kind: output, shape index: {}]
  %s5 = sld [smem:[#allocation0]]
  $region65: #{tpu_custom_call.1} parent=0
    _
  %s7 = ssub.s32 1, %s5
  %s8 = scalar_select 0, %s7, %s5
  $region1: #{tpu_custom_call.1} parent=0
    #allocation2 [shape = 'u8[2048]{0}', space=vmem, size = 0x800, scoped, tag = 'input window, operand 0']
    #allocation3 [shape = 's32[2]{0}', space=sflag, size = 0x8, scoped, tag = 'scoped memory for tpu_custom_call.1']
    #allocation4 [shape = 's32[2]{0}', space=sflag, size = 0x8, scoped, tag = 'scoped memory for tpu_custom_call.1']
    #allocation5 [shape = 'u8[2048]{0}', space=vmem, size = 0x800, scoped, tag = 'input window, operand 1']
    #allocation6 [shape = 's32[2]{0}', space=sflag, size = 0x8, scoped, tag = 'scoped memory for tpu_custom_call.1']
    #allocation7 [shape = 'u8[8192]{0}', space=vmem, size = 0x2000, scoped, tag = 'input window, operand 2, single buffered']
    #allocation8 [shape = 'u8[8192]{0}', space=vmem, size = 0x2000, scoped, tag = 'input window, operand 3, single buffered']
    #allocation9 [shape = 's32[1]{0}', space=sflag, size = 0x4, scoped, tag = 'scoped memory for tpu_custom_call.1']
    #allocation10 [shape = 'u8[2048]{0}', space=vmem, size = 0x800, scoped, tag = 'output window, operand 0']
    %9 = vsyncpa [#allocation3], 0
    %s10 = scalar_lea.sflag [#allocation3], 1
    %11 = vsyncpa %s10, 0
    %12 = vsyncpa [#allocation6], 0
    %s13 = scalar_lea.sflag [#allocation6], 1
    %14 = vsyncpa %s13, 0
    %15 = vsyncpa [#allocation9], 0
    %16 = vsyncpa [#allocation4], 0
    %s17 = scalar_lea.sflag [#allocation4], 1
    %18 = vsyncpa %s17, 0
    loop: start=0, step=1, limit=4
    $region2: #{tpu_custom_call.1} parent=1 // loop_pre_header
      _
    $region3: #{tpu_custom_call.1} parent=1 // loop_header
      %s20 = sphi 0, %s24
      %p21 = scmp.ge.s32.totalorder %s20, 4
      %s30 = sphi 0, %s32
      %s33 = sphi 0, %s30
      %s34 = sphi 0, %s33
      %s50 = sphi 0, %s34
      %s56 = sphi 0, %s58
      %s59 = sphi 0, %s56
      %s60 = sphi 0, %s59
      %s76 = sphi 0, %s60
      %s80 = sphi 0, %s80
      %s82 = sphi 0, %s80
      %s83 = sphi 0, %s82
      %s97 = sphi 0, %s83
      %s101 = sphi 0, %s101
      %s103 = sphi 0, %s101
      %s104 = sphi 0, %s103
      %s118 = sphi 0, %s104
      %s124 = sphi 0, %s126
      %s127 = sphi 0, %s124
      %s128 = sphi 0, %s127
      %s144 = sphi 0, %s128
    $region4: #{tpu_custom_call.1} parent=1 // loop_header_branch
      %23 = sbr.rel (%p21) target = $region8
    $region5: #{tpu_custom_call.1} parent=1 // loop_body
      %s25 = ssub.s32 %s20, 1
      %s26 = ssub.s32 %s20, 2
      %s27 = sadd.s32 %s20, 1
      %s28 = ssub.s32 %s20, %s27
      %p29 = scmp.eq.s32.totalorder %s28, 0
      %s31 = sadd.s32 %s30, 1
      %s32 = scalar_select %p29, %s30, %s31
      %p35 = pneg %p29
      %p36 = scmp.eq.s32.totalorder %s20, 1
      %p37 = por %p35, %p36
      %p38 = scmp.ne.s32.totalorder %s30, %s33
      %p39 = scmp.eq.s32.totalorder %s20, 0
      %p40 = por %p38, %p39
      %p41 = scmp.ne.s32.totalorder %s30, %s33
      %p42 = scmp.eq.s32.totalorder %s25, 1
      %p43 = por %p41, %p42
      %p44 = scmp.ne.s32.totalorder %s33, %s34
      %p45 = scmp.eq.s32.totalorder %s25, 0
      %p46 = por %p44, %p45
      %p47 = scmp.ne.s32.totalorder %s33, %s34
      %p48 = scmp.eq.s32.totalorder %s26, 1
      %p49 = por %p47, %p48
      %p51 = scmp.ne.s32.totalorder %s34, %s50
      %p52 = scmp.eq.s32.totalorder %s26, 0
      %p53 = por %p51, %p52
      %s54 = ssub.s32 %s20, %s27
      %p55 = scmp.eq.s32.totalorder %s54, 0
      %s57 = sadd.s32 %s56, 1
      %s58 = scalar_select %p55, %s56, %s57
      %p61 = pneg %p55
      %p62 = scmp.eq.s32.totalorder %s20, 1
      %p63 = por %p61, %p62
      %p64 = scmp.ne.s32.totalorder %s56, %s59
      %p65 = scmp.eq.s32.totalorder %s20, 0
      %p66 = por %p64, %p65
      %p67 = scmp.ne.s32.totalorder %s56, %s59
      %p68 = scmp.eq.s32.totalorder %s25, 1
      %p69 = por %p67, %p68
      %p70 = scmp.ne.s32.totalorder %s59, %s60
      %p71 = scmp.eq.s32.totalorder %s25, 0
      %p72 = por %p70, %p71
      %p73 = scmp.ne.s32.totalorder %s59, %s60
      %p74 = scmp.eq.s32.totalorder %s26, 1
      %p75 = por %p73, %p74
      %p77 = scmp.ne.s32.totalorder %s60, %s76
      %p78 = scmp.eq.s32.totalorder %s26, 0
      %p79 = por %p77, %p78
      %s81 = sadd.s32 %s80, 1
      %p84 = scmp.eq.s32.totalorder %s20, 1
      %p85 = scmp.ne.s32.totalorder %s80, %s82
      %p86 = scmp.eq.s32.totalorder %s20, 0
      %p87 = por %p85, %p86
      %p88 = scmp.ne.s32.totalorder %s80, %s82
      %p89 = scmp.eq.s32.totalorder %s25, 1
      %p90 = por %p88, %p89
      %p91 = scmp.ne.s32.totalorder %s82, %s83
      %p92 = scmp.eq.s32.totalorder %s25, 0
      %p93 = por %p91, %p92
      %p94 = scmp.ne.s32.totalorder %s82, %s83
      %p95 = scmp.eq.s32.totalorder %s26, 1
      %p96 = por %p94, %p95
      %p98 = scmp.ne.s32.totalorder %s83, %s97
      %p99 = scmp.eq.s32.totalorder %s26, 0
      %p100 = por %p98, %p99
      %s102 = sadd.s32 %s101, 1
      %p105 = scmp.eq.s32.totalorder %s20, 1
      %p106 = scmp.ne.s32.totalorder %s101, %s103
      %p107 = scmp.eq.s32.totalorder %s20, 0
      %p108 = por %p106, %p107
      %p109 = scmp.ne.s32.totalorder %s101, %s103
      %p110 = scmp.eq.s32.totalorder %s25, 1
      %p111 = por %p109, %p110
      %p112 = scmp.ne.s32.totalorder %s103, %s104
      %p113 = scmp.eq.s32.totalorder %s25, 0
      %p114 = por %p112, %p113
      %p115 = scmp.ne.s32.totalorder %s103, %s104
      %p116 = scmp.eq.s32.totalorder %s26, 1
      %p117 = por %p115, %p116
      %p119 = scmp.ne.s32.totalorder %s104, %s118
      %p120 = scmp.eq.s32.totalorder %s26, 0
      %p121 = por %p119, %p120
      %s122 = ssub.s32 %s20, %s27
      %p123 = scmp.eq.s32.totalorder %s122, 0
      %s125 = sadd.s32 %s124, 1
      %s126 = scalar_select %p123, %s124, %s125
      %p129 = pneg %p123
      %p130 = scmp.eq.s32.totalorder %s20, 1
      %p131 = por %p129, %p130
      %p132 = scmp.ne.s32.totalorder %s124, %s127
      %p133 = scmp.eq.s32.totalorder %s20, 0
      %p134 = por %p132, %p133
      %p135 = scmp.ne.s32.totalorder %s124, %s127
      %p136 = scmp.eq.s32.totalorder %s25, 1
      %p137 = por %p135, %p136
      %p138 = scmp.ne.s32.totalorder %s127, %s128
      %p139 = scmp.eq.s32.totalorder %s25, 0
      %p140 = por %p138, %p139
      %p141 = scmp.ne.s32.totalorder %s127, %s128
      %p142 = scmp.eq.s32.totalorder %s26, 1
      %p143 = por %p141, %p142
      %p145 = scmp.ne.s32.totalorder %s128, %s144
      %p146 = scmp.eq.s32.totalorder %s26, 0
      %p147 = por %p145, %p146
      %p148 = scmp.le.s32.totalorder 1, %s20
      %p149 = scmp.lt.s32.totalorder %s20, 3
      %p150 = pnand %p148, %p149
      %p151 = pneg %p150
      // Predicated region
      $region9: #{tpu_custom_call.1} parent=5 // pred_check
        _
      $region10: #{tpu_custom_call.1} parent=5 // pred_check_branch
        %153 = sbr.rel (%p150) target = $region12
      $region11: #{tpu_custom_call.1} parent=5 // pred_region
        %s154 = ssub.s32 %s20, 1
        // Predicated region
        $region13: #{tpu_custom_call.1} parent=11 // pred_check
          %p155 = pneg %p93
        $region14: #{tpu_custom_call.1} parent=11 // pred_check_branch
          %157 = sbr.rel (%p155) target = $region16
        $region15: #{tpu_custom_call.1} parent=11 // pred_region
          %159 = vsyncadd [#allocation6], 0
          %s160 = sshll.u32 %s2, 4
          %s161 = int_to_ptr.hbm [resolvable:$true] %s160
          %s162 = sshll.u32 [#allocation7], 4
          %s163 = int_to_ptr.vmem [resolvable:$true] %s162
          %168 = dma.hbm_to_vmem [thread:$0]  %s161, 256, %s163, [#allocation6], 64, 64, 4
        $region16: #{tpu_custom_call.1} parent=11 // pred_fallthru
          _
        // Predicated region
        $region17: #{tpu_custom_call.1} parent=11 // pred_check
          %p169 = pneg %p114
        $region18: #{tpu_custom_call.1} parent=11 // pred_check_branch
          %171 = sbr.rel (%p169) target = $region20
        $region19: #{tpu_custom_call.1} parent=11 // pred_region
          %173 = vsyncadd [#allocation9], 0
          %s174 = sshll.u32 %s3, 4
          %s175 = int_to_ptr.hbm [resolvable:$true] %s174
          %s176 = sshll.u32 [#allocation8], 4
          %s177 = int_to_ptr.vmem [resolvable:$true] %s176
          %182 = dma.hbm_to_vmem [thread:$0]  %s175, 256, %s177, [#allocation9], 64, 64, 4
        $region20: #{tpu_custom_call.1} parent=11 // pred_fallthru
          _
      $region12: #{tpu_custom_call.1} parent=5 // pred_fallthru
        _
      %p183 = scmp.lt.s32.totalorder %s20, 2
      // Predicated region
      $region21: #{tpu_custom_call.1} parent=5 // pred_check
        %p184 = pneg %p183
      $region22: #{tpu_custom_call.1} parent=5 // pred_check_branch
        %186 = sbr.rel (%p184) target = $region24
      $region23: #{tpu_custom_call.1} parent=5 // pred_region
        // Predicated region
        $region25: #{tpu_custom_call.1} parent=23 // pred_check
          %p187 = pneg %p40
        $region26: #{tpu_custom_call.1} parent=23 // pred_check_branch
          %189 = sbr.rel (%p187) target = $region28
        $region27: #{tpu_custom_call.1} parent=23 // pred_region
          %s190 = sand.u32 %s30, 1
          %s191 = scalar_lea.sflag [#allocation3], %s190
          %s192 = sand.u32 %s30, 1
          %s193 = smul.addr %s192, 2
          %s194 = scalar_lea.vmem [#allocation2], %s193
          %s195 = smul.u32 2, %s20
          %197 = vsyncadd %s191, 0
          %s198 = scalar_lea.hbm %s0, %s195
          %s200 = sshll.u32 %s198, 4
          %s201 = int_to_ptr.hbm [resolvable:$true] %s200
          %s202 = sshll.u32 %s194, 4
          %s203 = int_to_ptr.vmem [resolvable:$true] %s202
          %205 = dma.hbm_to_vmem [thread:$0]  %s201, 32, %s203, %s191
        $region28: #{tpu_custom_call.1} parent=23 // pred_fallthru
          _
        // Predicated region
        $region29: #{tpu_custom_call.1} parent=23 // pred_check
          %p206 = pneg %p66
        $region30: #{tpu_custom_call.1} parent=23 // pred_check_branch
          %208 = sbr.rel (%p206) target = $region32
        $region31: #{tpu_custom_call.1} parent=23 // pred_region
          %s209 = sand.u32 %s20, 1
          %s210 = scalar_lea.sflag [#allocation6], %s209
          %s211 = sand.u32 %s56, 1
          %s212 = smul.addr %s211, 2
          %s213 = scalar_lea.vmem [#allocation5], %s212
          %s214 = smul.u32 2, %s20
          %216 = vsyncadd %s210, 0
          %s217 = scalar_lea.hbm %s1, %s214
          %s219 = sshll.u32 %s217, 4
          %s220 = int_to_ptr.hbm [resolvable:$true] %s219
          %s221 = sshll.u32 %s213, 4
          %s222 = int_to_ptr.vmem [resolvable:$true] %s221
          %224 = dma.hbm_to_vmem [thread:$0]  %s220, 32, %s222, %s210
        $region32: #{tpu_custom_call.1} parent=23 // pred_fallthru
          _
      $region24: #{tpu_custom_call.1} parent=5 // pred_fallthru
        _
      %p225 = scmp.le.s32.totalorder 1, %s20
      %p226 = scmp.lt.s32.totalorder %s20, 3
      %p227 = pnand %p225, %p226
      %p228 = pneg %p227
      // Predicated region
      $region33: #{tpu_custom_call.1} parent=5 // pred_check
        _
      $region34: #{tpu_custom_call.1} parent=5 // pred_check_branch
        %230 = sbr.rel (%p227) target = $region36
      $region35: #{tpu_custom_call.1} parent=5 // pred_region
        %s231 = ssub.s32 %s20, 1
        %s232 = sand.u32 %s33, 1
        %s233 = scalar_lea.sflag [#allocation3], %s232
        %s234 = sand.u32 %s33, 1
        %s235 = smul.addr %s234, 2
        %s236 = scalar_lea.vmem [#allocation2], %s235
        // Predicated region
        $region37: #{tpu_custom_call.1} parent=35 // pred_check
          %p237 = pneg %p46
        $region38: #{tpu_custom_call.1} parent=35 // pred_check_branch
          %239 = sbr.rel (%p237) target = $region40
        $region39: #{tpu_custom_call.1} parent=35 // pred_region
          %241 = dma.done %s233, 32
        $region40: #{tpu_custom_call.1} parent=35 // pred_fallthru
          _
        %s242 = sand.u32 %s25, 1
        %s243 = scalar_lea.sflag [#allocation6], %s242
        %s244 = sand.u32 %s59, 1
        %s245 = smul.addr %s244, 2
        %s246 = scalar_lea.vmem [#allocation5], %s245
        // Predicated region
        $region41: #{tpu_custom_call.1} parent=35 // pred_check
          %p247 = pneg %p72
        $region42: #{tpu_custom_call.1} parent=35 // pred_check_branch
          %249 = sbr.rel (%p247) target = $region44
        $region43: #{tpu_custom_call.1} parent=35 // pred_region
          %251 = dma.done %s243, 32
        $region44: #{tpu_custom_call.1} parent=35 // pred_fallthru
          _
        // Predicated region
        $region45: #{tpu_custom_call.1} parent=35 // pred_check
          %p252 = pneg %p93
        $region46: #{tpu_custom_call.1} parent=35 // pred_check_branch
          %254 = sbr.rel (%p252) target = $region48
        $region47: #{tpu_custom_call.1} parent=35 // pred_region
          %256 = dma.done [#allocation6], 256
        $region48: #{tpu_custom_call.1} parent=35 // pred_fallthru
          _
        // Predicated region
        $region49: #{tpu_custom_call.1} parent=35 // pred_check
          %p257 = pneg %p114
        $region50: #{tpu_custom_call.1} parent=35 // pred_check_branch
          %259 = sbr.rel (%p257) target = $region52
        $region51: #{tpu_custom_call.1} parent=35 // pred_region
          %261 = dma.done [#allocation9], 256
        $region52: #{tpu_custom_call.1} parent=35 // pred_fallthru
          _
        %s262 = sand.u32 %s33, 1
        %s263 = scalar_lea.sflag [#allocation3], %s262
        %s264 = sand.u32 %s33, 1
        %s265 = smul.addr %s264, 2
        %s266 = scalar_lea.vmem [#allocation2], %s265
        %p267 = pneg %p46
        %p268 = pneg %p43
        %s269 = sand.u32 %s25, 1
        %s270 = scalar_lea.sflag [#allocation6], %s269
        %s271 = sand.u32 %s59, 1
        %s272 = smul.addr %s271, 2
        %s273 = scalar_lea.vmem [#allocation5], %s272
        %p274 = pneg %p72
        %p275 = pneg %p69
        %p276 = pneg %p93
        %p277 = pneg %p90
        %p278 = pneg %p114
        %p279 = pneg %p111
        %p280 = pneg %p140
        %p281 = pneg %p137
        %s282 = sand.u32 %s127, 1
        %s283 = scalar_lea.sflag [#allocation4], %s282
        %s284 = sand.u32 %s127, 1
        %s285 = smul.addr %s284, 2
        %s286 = scalar_lea.vmem [#allocation10], %s285
        %s287 = smul.u32 2, %s25
        %s288 = smul.u32 2, %s25
        %s289 = smul.u32 2, %s25
        %v291 = vld [vmem:[%s236] sm:$0x3]
        %v292 = vld [vmem:[%s246] sm:$0x3]
        %v293 = vlaneseq
        %v294 = vshrl.u32 %v293, 7
        %v295 = vadd.s32 %v294, 8
        %v296 = vadd.s32 %v294, 16
        %v297 = vadd.s32 %v294, 24
        %v298 = vadd.s32 %v294, 32
        %v299 = vadd.s32 %v294, 40
        %v300 = vadd.s32 %v294, 48
        %v301 = vadd.s32 %v294, 56
        %v302 = vperm.slane %v291, 0
        %v303 = vperm.slane %v291, 1
        %vm304 = vcmp.eq.s32.totalorder %v294, %v302
        %vm305 = vcmp.eq.s32.totalorder %v294, %v303
        %vm306 = vcmp.eq.s32.totalorder %v295, %v302
        %vm307 = vcmp.eq.s32.totalorder %v295, %v303
        %vm308 = vcmp.eq.s32.totalorder %v296, %v302
        %vm309 = vcmp.eq.s32.totalorder %v296, %v303
        %vm310 = vcmp.eq.s32.totalorder %v297, %v302
        %vm311 = vcmp.eq.s32.totalorder %v297, %v303
        %vm312 = vcmp.eq.s32.totalorder %v298, %v302
        %vm313 = vcmp.eq.s32.totalorder %v298, %v303
        %vm314 = vcmp.eq.s32.totalorder %v299, %v302
        %vm315 = vcmp.eq.s32.totalorder %v299, %v303
        %vm316 = vcmp.eq.s32.totalorder %v300, %v302
        %vm317 = vcmp.eq.s32.totalorder %v300, %v303
        %vm318 = vcmp.eq.s32.totalorder %v301, %v302
        %vm319 = vcmp.eq.s32.totalorder %v301, %v303
        %v320 = vsel %vm304, 1, 0
        %v321 = vsel %vm305, 1, 0
        %v322 = vsel %vm306, 1, 0
        %v323 = vsel %vm307, 1, 0
        %v324 = vsel %vm308, 1, 0
        %v325 = vsel %vm309, 1, 0
        %v326 = vsel %vm310, 1, 0
        %v327 = vsel %vm311, 1, 0
        %v328 = vsel %vm312, 1, 0
        %v329 = vsel %vm313, 1, 0
        %v330 = vsel %vm314, 1, 0
        %v331 = vsel %vm315, 1, 0
        %v332 = vsel %vm316, 1, 0
        %v333 = vsel %vm317, 1, 0
        %v334 = vsel %vm318, 1, 0
        %v335 = vsel %vm319, 1, 0
        %v336 = vcvt.s32.f32 %v320
        %v337 = vcvt.s32.f32 %v321
        %v338 = vcvt.s32.f32 %v322
        %v339 = vcvt.s32.f32 %v323
        %v340 = vcvt.s32.f32 %v324
        %v341 = vcvt.s32.f32 %v325
        %v342 = vcvt.s32.f32 %v326
        %v343 = vcvt.s32.f32 %v327
        %v344 = vcvt.s32.f32 %v328
        %v345 = vcvt.s32.f32 %v329
        %v346 = vcvt.s32.f32 %v330
        %v347 = vcvt.s32.f32 %v331
        %v348 = vcvt.s32.f32 %v332
        %v349 = vcvt.s32.f32 %v333
        %v350 = vcvt.s32.f32 %v334
        %v351 = vcvt.s32.f32 %v335
        %v352 = vpack.c.bf16 %v338, %v336
        %v353 = vpack.c.bf16 %v339, %v337
        %v354 = vpack.c.bf16 %v342, %v340
        %v355 = vpack.c.bf16 %v343, %v341
        %v356 = vpack.c.bf16 %v346, %v344
        %v357 = vpack.c.bf16 %v347, %v345
        %v358 = vpack.c.bf16 %v350, %v348
        %v359 = vpack.c.bf16 %v351, %v349
        %v360 = vperm.slane %v292, 0
        %v361 = vperm.slane %v292, 1
        %vm362 = vcmp.eq.s32.totalorder %v294, %v360
        %vm363 = vcmp.eq.s32.totalorder %v294, %v361
        %vm364 = vcmp.eq.s32.totalorder %v295, %v360
        %vm365 = vcmp.eq.s32.totalorder %v295, %v361
        %vm366 = vcmp.eq.s32.totalorder %v296, %v360
        %vm367 = vcmp.eq.s32.totalorder %v296, %v361
        %vm368 = vcmp.eq.s32.totalorder %v297, %v360
        %vm369 = vcmp.eq.s32.totalorder %v297, %v361
        %vm370 = vcmp.eq.s32.totalorder %v298, %v360
        %vm371 = vcmp.eq.s32.totalorder %v298, %v361
        %vm372 = vcmp.eq.s32.totalorder %v299, %v360
        %vm373 = vcmp.eq.s32.totalorder %v299, %v361
        %v374 = vsel %vm362, 1, 0
        %v375 = vsel %vm363, 1, 0
        %v376 = vsel %vm364, 1, 0
        %v377 = vsel %vm365, 1, 0
        %v378 = vsel %vm366, 1, 0
        %v379 = vsel %vm367, 1, 0
        %v380 = vsel %vm368, 1, 0
        %v381 = vsel %vm369, 1, 0
        %v382 = vsel %vm370, 1, 0
        %v383 = vsel %vm371, 1, 0
        %v384 = vsel %vm372, 1, 0
        %v385 = vsel %vm373, 1, 0
        %v386 = vcvt.s32.f32 %v374
        %v387 = vcvt.s32.f32 %v375
        %v388 = vcvt.s32.f32 %v376
        %v389 = vcvt.s32.f32 %v377
        %v390 = vcvt.s32.f32 %v378
        %v391 = vcvt.s32.f32 %v379
        %v392 = vcvt.s32.f32 %v380
        %v393 = vcvt.s32.f32 %v381
        %v394 = vcvt.s32.f32 %v382
        %v395 = vcvt.s32.f32 %v383
        %v396 = vcvt.s32.f32 %v384
        %v397 = vcvt.s32.f32 %v385
        %v398 = vpack.c.bf16 %v388, %v386
        %v399 = vpack.c.bf16 %v389, %v387
        %v400 = vpack.c.bf16 %v392, %v390
        %v401 = vpack.c.bf16 %v393, %v391
        %v402 = vpack.c.bf16 %v396, %v394
        %v403 = vpack.c.bf16 %v397, %v395
        %v404 = vld [vmem:[#allocation7] sm:$0xf]
        %v405 = vld [vmem:[#allocation7 + $0x4] sm:$0xf]
        %v406 = vld [vmem:[#allocation7 + $0x8] sm:$0xf]
        %v407 = vld [vmem:[#allocation7 + $0xc] sm:$0xf]
        %v412 = vunpack.c.l.b16 %v404
        %v413 = vunpack.c.l.b16 %v405
        %v414 = vunpack.c.l.b16 %v406
        %v415 = vunpack.c.l.b16 %v407
        %v416 = vpack.c.b16 %v413, %v412
        %v417 = vpack.c.b16 %v415, %v414
        %vm418 = vcmask 523264
        %v420 = vsel %vm418, %v416, 0
        %v423 = vsel %vm418, %v417, 0
        %425 = vmatpush.bf16.msra.mxu0 0
        %426 = vmatpush.bf16.msra.mxu0 0
        %427 = vmatpush.bf16.msra.mxu0 0
        %428 = vmatpush.bf16.msra.mxu0 0
        %429 = vmatpush.bf16.msra.mxu0 %v358
        %430 = vmatpush.bf16.msra.mxu0 %v356
        %431 = vmatpush.bf16.msra.mxu0 %v354
        %432 = vmatpush.bf16.msra.mxu0 %v352
        %433 = vmatmul.bf16.gmra.mxu0 %v420
        %v434 = vpop.f32.mrf.mxu0
        %v435 = vadd.f32 0.0, %v434
        %v436 = vpop.f32.mrf.mxu0
        %v437 = vadd.f32 0.0, %v436
        %438 = vmatmul.bf16.gmra.mxu0 %v423
        %v439 = vpop.f32.mrf.mxu0
        %v440 = vadd.f32 0.0, %v439
        %v441 = vpop.f32.mrf.mxu0
        %v442 = vadd.f32 0.0, %v441
        %443 = vdwg.mxu0
        %444 = vmatpush.bf16.msra.mxu0 0
        %445 = vmatpush.bf16.msra.mxu0 0
        %446 = vmatpush.bf16.msra.mxu0 0
        %447 = vmatpush.bf16.msra.mxu0 0
        %448 = vmatpush.bf16.msra.mxu0 %v359
        %449 = vmatpush.bf16.msra.mxu0 %v357
        %450 = vmatpush.bf16.msra.mxu0 %v355
        %451 = vmatpush.bf16.msra.mxu0 %v353
        %452 = vmatmul.bf16.gmra.mxu0 %v420
        %v453 = vpop.f32.mrf.mxu0
        %v454 = vadd.f32 0.0, %v453
        %v455 = vpop.f32.mrf.mxu0
        %v456 = vadd.f32 0.0, %v455
        %457 = vmatmul.bf16.gmra.mxu0 %v423
        %v458 = vpop.f32.mrf.mxu0
        %v459 = vadd.f32 0.0, %v458
        %v460 = vpop.f32.mrf.mxu0
        %v461 = vadd.f32 0.0, %v460
        %462 = vdwg.mxu0
        %v463 = vld [vmem:[#allocation8] sm:$0xf]
        %v464 = vld [vmem:[#allocation8 + $0x4] sm:$0xf]
        %v465 = vld [vmem:[#allocation8 + $0x8] sm:$0xf]
        %v466 = vld [vmem:[#allocation8 + $0xc] sm:$0xf]
        %v471 = vunpack.c.l.b16 %v463
        %v472 = vunpack.c.l.b16 %v464
        %v473 = vunpack.c.l.b16 %v465
        %v474 = vunpack.c.l.b16 %v466
        %v475 = vpack.c.b16 %v472, %v471
        %v476 = vpack.c.b16 %v474, %v473
        %vm477 = vcmask 392192
        %v479 = vsel %vm477, %v475, 0
        %v482 = vsel %vm477, %v476, 0
        %484 = vmatpush.bf16.msra.mxu0 0
        %485 = vmatpush.bf16.msra.mxu0 0
        %486 = vmatpush.bf16.msra.mxu0 0
        %487 = vmatpush.bf16.msra.mxu0 0
        %488 = vmatpush.bf16.msra.mxu0 0
        %489 = vmatpush.bf16.msra.mxu0 %v402
        %490 = vmatpush.bf16.msra.mxu0 %v400
        %491 = vmatpush.bf16.msra.mxu0 %v398
        %492 = vmatmul.bf16.gmra.mxu0 %v479
        %v493 = vpop.f32.mrf.mxu0
        %v494 = vadd.f32 0.0, %v493
        %v495 = vpop.f32.mrf.mxu0
        %v496 = vadd.f32 0.0, %v495
        %497 = vmatmul.bf16.gmra.mxu0 %v482
        %v498 = vpop.f32.mrf.mxu0
        %v499 = vadd.f32 0.0, %v498
        %v500 = vpop.f32.mrf.mxu0
        %v501 = vadd.f32 0.0, %v500
        %502 = vdwg.mxu0
        %503 = vmatpush.bf16.msra.mxu0 0
        %504 = vmatpush.bf16.msra.mxu0 0
        %505 = vmatpush.bf16.msra.mxu0 0
        %506 = vmatpush.bf16.msra.mxu0 0
        %507 = vmatpush.bf16.msra.mxu0 0
        %508 = vmatpush.bf16.msra.mxu0 %v403
        %509 = vmatpush.bf16.msra.mxu0 %v401
        %510 = vmatpush.bf16.msra.mxu0 %v399
        %511 = vmatmul.bf16.gmra.mxu0 %v479
        %v512 = vpop.f32.mrf.mxu0
        %v513 = vadd.f32 0.0, %v512
        %v514 = vpop.f32.mrf.mxu0
        %v515 = vadd.f32 0.0, %v514
        %516 = vmatmul.bf16.gmra.mxu0 %v482
        %v517 = vpop.f32.mrf.mxu0
        %v518 = vadd.f32 0.0, %v517
        %v519 = vpop.f32.mrf.mxu0
        %v520 = vadd.f32 0.0, %v519
        %521 = vdwg.mxu0
        %v522 = vmul.f32 %v435, %v494
        %v523 = vmul.f32 %v454, %v513
        %v524 = vmul.f32 %v437, %v496
        %v525 = vmul.f32 %v456, %v515
        %v526 = vmul.f32 %v440, %v499
        %v527 = vmul.f32 %v459, %v518
        %v528 = vmul.f32 %v442, %v501
        %v529 = vmul.f32 %v461, %v520
        %v530 = vadd.f32 %v522, %v524
        %v531 = vadd.f32 %v530, %v526
        %v532 = vadd.f32 %v531, %v528
        %v533 = vrot.slane %v532, 4
        %v534 = vadd.f32 %v532, %v533
        %v535 = vrot.slane %v534, 2
        %v536 = vadd.f32 %v534, %v535
        %v537 = vrot.slane %v536, 1
        %v538 = vadd.f32 %v536, %v537
        %v539 = vadd.f32 %v523, %v525
        %v540 = vadd.f32 %v539, %v527
        %v541 = vadd.f32 %v540, %v529
        %v542 = vrot.slane %v541, 4
        %v543 = vadd.f32 %v541, %v542
        %v544 = vrot.slane %v543, 2
        %v545 = vadd.f32 %v543, %v544
        %v546 = vrot.slane %v545, 1
        %v547 = vadd.f32 %v545, %v546
        %v550 = vrot.slane %v547, 7
        %vm551 = vcmask 1040384
        %v552 = vsel %vm551, %v538, %v550
        %v554 = vlaneseq
        %vm555 = vcmp.ge.s32.totalorder %v554, 0
        %vm556 = vcmp.lt.s32.totalorder %v554, 256
        %vm557 = vmand %vm555, %vm556
        %558 = vst.msk [vmem:[%s286] sm:$0x3] %vm557, %v552
        %s559 = sand.u32 %s127, 1
        %s560 = scalar_lea.sflag [#allocation4], %s559
        %s561 = sand.u32 %s127, 1
        %s562 = smul.addr %s561, 2
        %s563 = scalar_lea.vmem [#allocation10], %s562
        // Predicated region
        $region53: #{tpu_custom_call.1} parent=35 // pred_check
          %p564 = pneg %p137
        $region54: #{tpu_custom_call.1} parent=35 // pred_check_branch
          %566 = sbr.rel (%p564) target = $region56
        $region55: #{tpu_custom_call.1} parent=35 // pred_region
          %s567 = smul.u32 2, %s25
          %569 = vsyncadd %s560, 0
          %s570 = scalar_lea.hbm %s4, %s567
          %s572 = sshll.u32 %s563, 4
          %s573 = int_to_ptr.vmem [resolvable:$true] %s572
          %s574 = sshll.u32 %s570, 4
          %s575 = int_to_ptr.hbm [resolvable:$true] %s574
          %577 = dma.vmem_to_hbm [thread:$0]  %s573, 32, %s575, %s560
        $region56: #{tpu_custom_call.1} parent=35 // pred_fallthru
          _
      $region36: #{tpu_custom_call.1} parent=5 // pred_fallthru
        _
      %p578 = scmp.le.s32.totalorder 2, %s20
      // Predicated region
      $region57: #{tpu_custom_call.1} parent=5 // pred_check
        %p579 = pneg %p578
      $region58: #{tpu_custom_call.1} parent=5 // pred_check_branch
        %581 = sbr.rel (%p579) target = $region60
      $region59: #{tpu_custom_call.1} parent=5 // pred_region
        %s582 = ssub.s32 %s20, 2
        // Predicated region
        $region61: #{tpu_custom_call.1} parent=59 // pred_check
          %p583 = pneg %p143
        $region62: #{tpu_custom_call.1} parent=59 // pred_check_branch
          %585 = sbr.rel (%p583) target = $region64
        $region63: #{tpu_custom_call.1} parent=59 // pred_region
          %s586 = sand.u32 %s128, 1
          %s587 = scalar_lea.sflag [#allocation4], %s586
          %s588 = sand.u32 %s128, 1
          %s589 = smul.addr %s588, 2
          %s590 = scalar_lea.vmem [#allocation10], %s589
          %592 = dma.done %s587, 32
        $region64: #{tpu_custom_call.1} parent=59 // pred_fallthru
          _
      $region60: #{tpu_custom_call.1} parent=5 // pred_fallthru
        _
    $region6: #{tpu_custom_call.1} parent=1 // loop_footer
      %s24 = sadd.s32 1, %s20
    $region7: #{tpu_custom_call.1} parent=1 // loop_footer_branch
      %19 = sbr.rel target = $region3
    $region8: #{tpu_custom_call.1} parent=1 // loop_exit
      _
    %593 = vsyncpa [#allocation3], 1
    %s594 = scalar_lea.sflag [#allocation3], 1
    %595 = vsyncpa %s594, 1
    %596 = vsyncpa [#allocation6], 1
    %s597 = scalar_lea.sflag [#allocation6], 1
    %598 = vsyncpa %s597, 1
    %599 = vsyncpa [#allocation9], 1
    %600 = vsyncpa [#allocation4], 1
    %s601 = scalar_lea.sflag [#allocation4], 1
    %602 = vsyncpa %s601, 1

// kernel: tpu_custom_call.1
$region0: #{tpu_custom_call.1}
  #allocation0 [shape = 'u32[]', space=smem, size = 0x4, offset = 0x4, fixed_abs, tag = 'smem constant byte address 0x4 - core index']
  #allocation1 [shape = 'u32[72,128]{1,0:T(1,128)}', space=vmem, size = 0x9000, scoped, tag = 'internal scratch']
  %s0 = inlined_call_operand.hbm [shape: s32[1,512], index: 0, kind: input, shape index: {}]
  %s1 = inlined_call_operand.hbm [shape: s32[1,512], index: 1, kind: input, shape index: {}]
  %s2 = inlined_call_operand.hbm [shape: bf16[32,64], index: 2, kind: input, shape index: {}]
  %s3 = inlined_call_operand.hbm [shape: bf16[32,48], index: 3, kind: input, shape index: {}]
  %s4 = inlined_call_operand.hbm [shape: f32[1,512], index: 4, kind: output, shape index: {}]
  %s5 = sld [smem:[#allocation0]]
  $region65: #{tpu_custom_call.1} parent=0
    _
  %s7 = ssub.s32 1, %s5
  %s8 = scalar_select 0, %s7, %s5
  $region1: #{tpu_custom_call.1} parent=0
    #allocation2 [shape = 'u8[2048]{0}', space=vmem, size = 0x800, scoped, tag = 'input window, operand 0']
    #allocation3 [shape = 's32[2]{0}', space=sflag, size = 0x8, scoped, tag = 'scoped memory for tpu_custom_call.1']
    #allocation4 [shape = 's32[2]{0}', space=sflag, size = 0x8, scoped, tag = 'scoped memory for tpu_custom_call.1']
    #allocation5 [shape = 'u8[2048]{0}', space=vmem, size = 0x800, scoped, tag = 'input window, operand 1']
    #allocation6 [shape = 's32[2]{0}', space=sflag, size = 0x8, scoped, tag = 'scoped memory for tpu_custom_call.1']
    #allocation7 [shape = 'u8[8192]{0}', space=vmem, size = 0x2000, scoped, tag = 'input window, operand 2, single buffered']
    #allocation8 [shape = 'u8[8192]{0}', space=vmem, size = 0x2000, scoped, tag = 'input window, operand 3, single buffered']
    #allocation9 [shape = 's32[1]{0}', space=sflag, size = 0x4, scoped, tag = 'scoped memory for tpu_custom_call.1']
    #allocation10 [shape = 'u8[2048]{0}', space=vmem, size = 0x800, scoped, tag = 'output window, operand 0']
    %9 = vsyncpa [#allocation3], 0
    %s10 = scalar_lea.sflag [#allocation3], 1
    %11 = vsyncpa %s10, 0
    %12 = vsyncpa [#allocation6], 0
    %s13 = scalar_lea.sflag [#allocation6], 1
    %14 = vsyncpa %s13, 0
    %15 = vsyncpa [#allocation9], 0
    %16 = vsyncpa [#allocation4], 0
    %s17 = scalar_lea.sflag [#allocation4], 1
    %18 = vsyncpa %s17, 0
    loop: start=0, step=1, limit=4
    $region2: #{tpu_custom_call.1} parent=1 // loop_pre_header
      _
    $region3: #{tpu_custom_call.1} parent=1 // loop_header
      %s20 = sphi 0, %s24
      %p21 = scmp.ge.s32.totalorder %s20, 4
      %s30 = sphi 0, %s32
      %s33 = sphi 0, %s30
      %s34 = sphi 0, %s33
      %s50 = sphi 0, %s34
      %s56 = sphi 0, %s58
      %s59 = sphi 0, %s56
      %s60 = sphi 0, %s59
      %s76 = sphi 0, %s60
      %s80 = sphi 0, %s80
      %s82 = sphi 0, %s80
      %s83 = sphi 0, %s82
      %s97 = sphi 0, %s83
      %s101 = sphi 0, %s101
      %s103 = sphi 0, %s101
      %s104 = sphi 0, %s103
      %s118 = sphi 0, %s104
      %s124 = sphi 0, %s126
      %s127 = sphi 0, %s124
      %s128 = sphi 0, %s127
      %s144 = sphi 0, %s128
    $region4: #{tpu_custom_call.1} parent=1 // loop_header_branch
      %23 = sbr.rel (%p21) target = $region8
    $region5: #{tpu_custom_call.1} parent=1 // loop_body
      %s25 = ssub.s32 %s20, 1
      %s26 = ssub.s32 %s20, 2
      %s27 = sadd.s32 %s20, 1
      %s28 = ssub.s32 %s20, %s27
      %p29 = scmp.eq.s32.totalorder %s28, 0
      %s31 = sadd.s32 %s30, 1
      %s32 = scalar_select %p29, %s30, %s31
      %p35 = pneg %p29
      %p36 = scmp.eq.s32.totalorder %s20, 1
      %p37 = por %p35, %p36
      %p38 = scmp.ne.s32.totalorder %s30, %s33
      %p39 = scmp.eq.s32.totalorder %s20, 0
      %p40 = por %p38, %p39
      %p41 = scmp.ne.s32.totalorder %s30, %s33
      %p42 = scmp.eq.s32.totalorder %s25, 1
      %p43 = por %p41, %p42
      %p44 = scmp.ne.s32.totalorder %s33, %s34
      %p45 = scmp.eq.s32.totalorder %s25, 0
      %p46 = por %p44, %p45
      %p47 = scmp.ne.s32.totalorder %s33, %s34
      %p48 = scmp.eq.s32.totalorder %s26, 1
      %p49 = por %p47, %p48
      %p51 = scmp.ne.s32.totalorder %s34, %s50
      %p52 = scmp.eq.s32.totalorder %s26, 0
      %p53 = por %p51, %p52
      %s54 = ssub.s32 %s20, %s27
      %p55 = scmp.eq.s32.totalorder %s54, 0
      %s57 = sadd.s32 %s56, 1
      %s58 = scalar_select %p55, %s56, %s57
      %p61 = pneg %p55
      %p62 = scmp.eq.s32.totalorder %s20, 1
      %p63 = por %p61, %p62
      %p64 = scmp.ne.s32.totalorder %s56, %s59
      %p65 = scmp.eq.s32.totalorder %s20, 0
      %p66 = por %p64, %p65
      %p67 = scmp.ne.s32.totalorder %s56, %s59
      %p68 = scmp.eq.s32.totalorder %s25, 1
      %p69 = por %p67, %p68
      %p70 = scmp.ne.s32.totalorder %s59, %s60
      %p71 = scmp.eq.s32.totalorder %s25, 0
      %p72 = por %p70, %p71
      %p73 = scmp.ne.s32.totalorder %s59, %s60
      %p74 = scmp.eq.s32.totalorder %s26, 1
      %p75 = por %p73, %p74
      %p77 = scmp.ne.s32.totalorder %s60, %s76
      %p78 = scmp.eq.s32.totalorder %s26, 0
      %p79 = por %p77, %p78
      %s81 = sadd.s32 %s80, 1
      %p84 = scmp.eq.s32.totalorder %s20, 1
      %p85 = scmp.ne.s32.totalorder %s80, %s82
      %p86 = scmp.eq.s32.totalorder %s20, 0
      %p87 = por %p85, %p86
      %p88 = scmp.ne.s32.totalorder %s80, %s82
      %p89 = scmp.eq.s32.totalorder %s25, 1
      %p90 = por %p88, %p89
      %p91 = scmp.ne.s32.totalorder %s82, %s83
      %p92 = scmp.eq.s32.totalorder %s25, 0
      %p93 = por %p91, %p92
      %p94 = scmp.ne.s32.totalorder %s82, %s83
      %p95 = scmp.eq.s32.totalorder %s26, 1
      %p96 = por %p94, %p95
      %p98 = scmp.ne.s32.totalorder %s83, %s97
      %p99 = scmp.eq.s32.totalorder %s26, 0
      %p100 = por %p98, %p99
      %s102 = sadd.s32 %s101, 1
      %p105 = scmp.eq.s32.totalorder %s20, 1
      %p106 = scmp.ne.s32.totalorder %s101, %s103
      %p107 = scmp.eq.s32.totalorder %s20, 0
      %p108 = por %p106, %p107
      %p109 = scmp.ne.s32.totalorder %s101, %s103
      %p110 = scmp.eq.s32.totalorder %s25, 1
      %p111 = por %p109, %p110
      %p112 = scmp.ne.s32.totalorder %s103, %s104
      %p113 = scmp.eq.s32.totalorder %s25, 0
      %p114 = por %p112, %p113
      %p115 = scmp.ne.s32.totalorder %s103, %s104
      %p116 = scmp.eq.s32.totalorder %s26, 1
      %p117 = por %p115, %p116
      %p119 = scmp.ne.s32.totalorder %s104, %s118
      %p120 = scmp.eq.s32.totalorder %s26, 0
      %p121 = por %p119, %p120
      %s122 = ssub.s32 %s20, %s27
      %p123 = scmp.eq.s32.totalorder %s122, 0
      %s125 = sadd.s32 %s124, 1
      %s126 = scalar_select %p123, %s124, %s125
      %p129 = pneg %p123
      %p130 = scmp.eq.s32.totalorder %s20, 1
      %p131 = por %p129, %p130
      %p132 = scmp.ne.s32.totalorder %s124, %s127
      %p133 = scmp.eq.s32.totalorder %s20, 0
      %p134 = por %p132, %p133
      %p135 = scmp.ne.s32.totalorder %s124, %s127
      %p136 = scmp.eq.s32.totalorder %s25, 1
      %p137 = por %p135, %p136
      %p138 = scmp.ne.s32.totalorder %s127, %s128
      %p139 = scmp.eq.s32.totalorder %s25, 0
      %p140 = por %p138, %p139
      %p141 = scmp.ne.s32.totalorder %s127, %s128
      %p142 = scmp.eq.s32.totalorder %s26, 1
      %p143 = por %p141, %p142
      %p145 = scmp.ne.s32.totalorder %s128, %s144
      %p146 = scmp.eq.s32.totalorder %s26, 0
      %p147 = por %p145, %p146
      %p148 = scmp.le.s32.totalorder 1, %s20
      %p149 = scmp.lt.s32.totalorder %s20, 3
      %p150 = pnand %p148, %p149
      %p151 = pneg %p150
      // Predicated region
      $region9: #{tpu_custom_call.1} parent=5 // pred_check
        _
      $region10: #{tpu_custom_call.1} parent=5 // pred_check_branch
        %153 = sbr.rel (%p150) target = $region12
      $region11: #{tpu_custom_call.1} parent=5 // pred_region
        %s154 = ssub.s32 %s20, 1
        // Predicated region
        $region13: #{tpu_custom_call.1} parent=11 // pred_check
          %p155 = pneg %p93
        $region14: #{tpu_custom_call.1} parent=11 // pred_check_branch
          %157 = sbr.rel (%p155) target = $region16
        $region15: #{tpu_custom_call.1} parent=11 // pred_region
          %159 = vsyncadd [#allocation6], 0
          %s160 = sshll.u32 %s2, 4
          %s161 = int_to_ptr.hbm [resolvable:$true] %s160
          %s162 = sshll.u32 [#allocation7], 4
          %s163 = int_to_ptr.vmem [resolvable:$true] %s162
          %168 = dma.hbm_to_vmem [thread:$0]  %s161, 256, %s163, [#allocation6], 64, 64, 4
        $region16: #{tpu_custom_call.1} parent=11 // pred_fallthru
          _
        // Predicated region
        $region17: #{tpu_custom_call.1} parent=11 // pred_check
          %p169 = pneg %p114
        $region18: #{tpu_custom_call.1} parent=11 // pred_check_branch
          %171 = sbr.rel (%p169) target = $region20
        $region19: #{tpu_custom_call.1} parent=11 // pred_region
          %173 = vsyncadd [#allocation9], 0
          %s174 = sshll.u32 %s3, 4
          %s175 = int_to_ptr.hbm [resolvable:$true] %s174
          %s176 = sshll.u32 [#allocation8], 4
          %s177 = int_to_ptr.vmem [resolvable:$true] %s176
          %182 = dma.hbm_to_vmem [thread:$0]  %s175, 256, %s177, [#allocation9], 64, 64, 4
        $region20: #{tpu_custom_call.1} parent=11 // pred_fallthru
          _
      $region12: #{tpu_custom_call.1} parent=5 // pred_fallthru
        _
      %p183 = scmp.lt.s32.totalorder %s20, 2
      // Predicated region
      $region21: #{tpu_custom_call.1} parent=5 // pred_check
        %p184 = pneg %p183
      $region22: #{tpu_custom_call.1} parent=5 // pred_check_branch
        %186 = sbr.rel (%p184) target = $region24
      $region23: #{tpu_custom_call.1} parent=5 // pred_region
        // Predicated region
        $region25: #{tpu_custom_call.1} parent=23 // pred_check
          %p187 = pneg %p40
        $region26: #{tpu_custom_call.1} parent=23 // pred_check_branch
          %189 = sbr.rel (%p187) target = $region28
        $region27: #{tpu_custom_call.1} parent=23 // pred_region
          %s190 = sand.u32 %s30, 1
          %s191 = scalar_lea.sflag [#allocation3], %s190
          %s192 = sand.u32 %s30, 1
          %s193 = smul.addr %s192, 2
          %s194 = scalar_lea.vmem [#allocation2], %s193
          %s195 = smul.u32 2, %s20
          %197 = vsyncadd %s191, 0
          %s198 = scalar_lea.hbm %s0, %s195
          %s200 = sshll.u32 %s198, 4
          %s201 = int_to_ptr.hbm [resolvable:$true] %s200
          %s202 = sshll.u32 %s194, 4
          %s203 = int_to_ptr.vmem [resolvable:$true] %s202
          %205 = dma.hbm_to_vmem [thread:$0]  %s201, 32, %s203, %s191
        $region28: #{tpu_custom_call.1} parent=23 // pred_fallthru
          _
        // Predicated region
        $region29: #{tpu_custom_call.1} parent=23 // pred_check
          %p206 = pneg %p66
        $region30: #{tpu_custom_call.1} parent=23 // pred_check_branch
          %208 = sbr.rel (%p206) target = $region32
        $region31: #{tpu_custom_call.1} parent=23 // pred_region
          %s209 = sand.u32 %s20, 1
          %s210 = scalar_lea.sflag [#allocation6], %s209
          %s211 = sand.u32 %s56, 1
          %s212 = smul.addr %s211, 2
          %s213 = scalar_lea.vmem [#allocation5], %s212
          %s214 = smul.u32 2, %s20
          %216 = vsyncadd %s210, 0
          %s217 = scalar_lea.hbm %s1, %s214
          %s219 = sshll.u32 %s217, 4
          %s220 = int_to_ptr.hbm [resolvable:$true] %s219
          %s221 = sshll.u32 %s213, 4
          %s222 = int_to_ptr.vmem [resolvable:$true] %s221
          %224 = dma.hbm_to_vmem [thread:$0]  %s220, 32, %s222, %s210
        $region32: #{tpu_custom_call.1} parent=23 // pred_fallthru
          _
      $region24: #{tpu_custom_call.1} parent=5 // pred_fallthru
        _
      %p225 = scmp.le.s32.totalorder 1, %s20
      %p226 = scmp.lt.s32.totalorder %s20, 3
      %p227 = pnand %p225, %p226
      %p228 = pneg %p227
      // Predicated region
      $region33: #{tpu_custom_call.1} parent=5 // pred_check
        _
      $region34: #{tpu_custom_call.1} parent=5 // pred_check_branch
        %230 = sbr.rel (%p227) target = $region36
      $region35: #{tpu_custom_call.1} parent=5 // pred_region
        %s231 = ssub.s32 %s20, 1
        %s232 = sand.u32 %s33, 1
        %s233 = scalar_lea.sflag [#allocation3], %s232
        %s234 = sand.u32 %s33, 1
        %s235 = smul.addr %s234, 2
        %s236 = scalar_lea.vmem [#allocation2], %s235
        // Predicated region
        $region37: #{tpu_custom_call.1} parent=35 // pred_check
          %p237 = pneg %p46
        $region38: #{tpu_custom_call.1} parent=35 // pred_check_branch
          %239 = sbr.rel (%p237) target = $region40
        $region39: #{tpu_custom_call.1} parent=35 // pred_region
          %241 = dma.done %s233, 32
        $region40: #{tpu_custom_call.1} parent=35 // pred_fallthru
          _
        %s242 = sand.u32 %s25, 1
        %s243 = scalar_lea.sflag [#allocation6], %s242
        %s244 = sand.u32 %s59, 1
        %s245 = smul.addr %s244, 2
        %s246 = scalar_lea.vmem [#allocation5], %s245
        // Predicated region
        $region41: #{tpu_custom_call.1} parent=35 // pred_check
          %p247 = pneg %p72
        $region42: #{tpu_custom_call.1} parent=35 // pred_check_branch
          %249 = sbr.rel (%p247) target = $region44
        $region43: #{tpu_custom_call.1} parent=35 // pred_region
          %251 = dma.done %s243, 32
        $region44: #{tpu_custom_call.1} parent=35 // pred_fallthru
          _
        // Predicated region
        $region45: #{tpu_custom_call.1} parent=35 // pred_check
          %p252 = pneg %p93
        $region46: #{tpu_custom_call.1} parent=35 // pred_check_branch
          %254 = sbr.rel (%p252) target = $region48
        $region47: #{tpu_custom_call.1} parent=35 // pred_region
          %256 = dma.done [#allocation6], 256
        $region48: #{tpu_custom_call.1} parent=35 // pred_fallthru
          _
        // Predicated region
        $region49: #{tpu_custom_call.1} parent=35 // pred_check
          %p257 = pneg %p114
        $region50: #{tpu_custom_call.1} parent=35 // pred_check_branch
          %259 = sbr.rel (%p257) target = $region52
        $region51: #{tpu_custom_call.1} parent=35 // pred_region
          %261 = dma.done [#allocation9], 256
        $region52: #{tpu_custom_call.1} parent=35 // pred_fallthru
          _
        %s262 = sand.u32 %s33, 1
        %s263 = scalar_lea.sflag [#allocation3], %s262
        %s264 = sand.u32 %s33, 1
        %s265 = smul.addr %s264, 2
        %s266 = scalar_lea.vmem [#allocation2], %s265
        %p267 = pneg %p46
        %p268 = pneg %p43
        %s269 = sand.u32 %s25, 1
        %s270 = scalar_lea.sflag [#allocation6], %s269
        %s271 = sand.u32 %s59, 1
        %s272 = smul.addr %s271, 2
        %s273 = scalar_lea.vmem [#allocation5], %s272
        %p274 = pneg %p72
        %p275 = pneg %p69
        %p276 = pneg %p93
        %p277 = pneg %p90
        %p278 = pneg %p114
        %p279 = pneg %p111
        %p280 = pneg %p140
        %p281 = pneg %p137
        %s282 = sand.u32 %s127, 1
        %s283 = scalar_lea.sflag [#allocation4], %s282
        %s284 = sand.u32 %s127, 1
        %s285 = smul.addr %s284, 2
        %s286 = scalar_lea.vmem [#allocation10], %s285
        %s287 = smul.u32 2, %s25
        %s288 = smul.u32 2, %s25
        %s289 = smul.u32 2, %s25
        %v291 = vld [vmem:[%s236] sm:$0x3]
        %v292 = vld [vmem:[%s246] sm:$0x3]
        %v293 = vlaneseq
        %v294 = vshrl.u32 %v293, 7
        %v295 = vadd.s32 %v294, 8
        %v296 = vadd.s32 %v294, 16
        %v297 = vadd.s32 %v294, 24
        %v298 = vadd.s32 %v294, 32
        %v299 = vadd.s32 %v294, 40
        %v300 = vadd.s32 %v294, 48
        %v301 = vadd.s32 %v294, 56
        %v302 = vperm.slane %v291, 0
        %v303 = vperm.slane %v291, 1
        %vm304 = vcmp.eq.s32.totalorder %v294, %v302
        %vm305 = vcmp.eq.s32.totalorder %v294, %v303
        %vm306 = vcmp.eq.s32.totalorder %v295, %v302
        %vm307 = vcmp.eq.s32.totalorder %v295, %v303
        %vm308 = vcmp.eq.s32.totalorder %v296, %v302
        %vm309 = vcmp.eq.s32.totalorder %v296, %v303
        %vm310 = vcmp.eq.s32.totalorder %v297, %v302
        %vm311 = vcmp.eq.s32.totalorder %v297, %v303
        %vm312 = vcmp.eq.s32.totalorder %v298, %v302
        %vm313 = vcmp.eq.s32.totalorder %v298, %v303
        %vm314 = vcmp.eq.s32.totalorder %v299, %v302
        %vm315 = vcmp.eq.s32.totalorder %v299, %v303
        %vm316 = vcmp.eq.s32.totalorder %v300, %v302
        %vm317 = vcmp.eq.s32.totalorder %v300, %v303
        %vm318 = vcmp.eq.s32.totalorder %v301, %v302
        %vm319 = vcmp.eq.s32.totalorder %v301, %v303
        %v320 = vsel %vm304, 1, 0
        %v321 = vsel %vm305, 1, 0
        %v322 = vsel %vm306, 1, 0
        %v323 = vsel %vm307, 1, 0
        %v324 = vsel %vm308, 1, 0
        %v325 = vsel %vm309, 1, 0
        %v326 = vsel %vm310, 1, 0
        %v327 = vsel %vm311, 1, 0
        %v328 = vsel %vm312, 1, 0
        %v329 = vsel %vm313, 1, 0
        %v330 = vsel %vm314, 1, 0
        %v331 = vsel %vm315, 1, 0
        %v332 = vsel %vm316, 1, 0
        %v333 = vsel %vm317, 1, 0
        %v334 = vsel %vm318, 1, 0
        %v335 = vsel %vm319, 1, 0
        %v336 = vcvt.s32.f32 %v320
        %v337 = vcvt.s32.f32 %v321
        %v338 = vcvt.s32.f32 %v322
        %v339 = vcvt.s32.f32 %v323
        %v340 = vcvt.s32.f32 %v324
        %v341 = vcvt.s32.f32 %v325
        %v342 = vcvt.s32.f32 %v326
        %v343 = vcvt.s32.f32 %v327
        %v344 = vcvt.s32.f32 %v328
        %v345 = vcvt.s32.f32 %v329
        %v346 = vcvt.s32.f32 %v330
        %v347 = vcvt.s32.f32 %v331
        %v348 = vcvt.s32.f32 %v332
        %v349 = vcvt.s32.f32 %v333
        %v350 = vcvt.s32.f32 %v334
        %v351 = vcvt.s32.f32 %v335
        %v352 = vpack.c.bf16 %v338, %v336
        %v353 = vpack.c.bf16 %v339, %v337
        %v354 = vpack.c.bf16 %v342, %v340
        %v355 = vpack.c.bf16 %v343, %v341
        %v356 = vpack.c.bf16 %v346, %v344
        %v357 = vpack.c.bf16 %v347, %v345
        %v358 = vpack.c.bf16 %v350, %v348
        %v359 = vpack.c.bf16 %v351, %v349
        %v360 = vperm.slane %v292, 0
        %v361 = vperm.slane %v292, 1
        %vm362 = vcmp.eq.s32.totalorder %v294, %v360
        %vm363 = vcmp.eq.s32.totalorder %v294, %v361
        %vm364 = vcmp.eq.s32.totalorder %v295, %v360
        %vm365 = vcmp.eq.s32.totalorder %v295, %v361
        %vm366 = vcmp.eq.s32.totalorder %v296, %v360
        %vm367 = vcmp.eq.s32.totalorder %v296, %v361
        %vm368 = vcmp.eq.s32.totalorder %v297, %v360
        %vm369 = vcmp.eq.s32.totalorder %v297, %v361
        %vm370 = vcmp.eq.s32.totalorder %v298, %v360
        %vm371 = vcmp.eq.s32.totalorder %v298, %v361
        %vm372 = vcmp.eq.s32.totalorder %v299, %v360
        %vm373 = vcmp.eq.s32.totalorder %v299, %v361
        %v374 = vsel %vm362, 1, 0
        %v375 = vsel %vm363, 1, 0
        %v376 = vsel %vm364, 1, 0
        %v377 = vsel %vm365, 1, 0
        %v378 = vsel %vm366, 1, 0
        %v379 = vsel %vm367, 1, 0
        %v380 = vsel %vm368, 1, 0
        %v381 = vsel %vm369, 1, 0
        %v382 = vsel %vm370, 1, 0
        %v383 = vsel %vm371, 1, 0
        %v384 = vsel %vm372, 1, 0
        %v385 = vsel %vm373, 1, 0
        %v386 = vcvt.s32.f32 %v374
        %v387 = vcvt.s32.f32 %v375
        %v388 = vcvt.s32.f32 %v376
        %v389 = vcvt.s32.f32 %v377
        %v390 = vcvt.s32.f32 %v378
        %v391 = vcvt.s32.f32 %v379
        %v392 = vcvt.s32.f32 %v380
        %v393 = vcvt.s32.f32 %v381
        %v394 = vcvt.s32.f32 %v382
        %v395 = vcvt.s32.f32 %v383
        %v396 = vcvt.s32.f32 %v384
        %v397 = vcvt.s32.f32 %v385
        %v398 = vpack.c.bf16 %v388, %v386
        %v399 = vpack.c.bf16 %v389, %v387
        %v400 = vpack.c.bf16 %v392, %v390
        %v401 = vpack.c.bf16 %v393, %v391
        %v402 = vpack.c.bf16 %v396, %v394
        %v403 = vpack.c.bf16 %v397, %v395
        %v404 = vld [vmem:[#allocation7] sm:$0xf]
        %v405 = vld [vmem:[#allocation7 + $0x4] sm:$0xf]
        %v406 = vld [vmem:[#allocation7 + $0x8] sm:$0xf]
        %v407 = vld [vmem:[#allocation7 + $0xc] sm:$0xf]
        %v412 = vunpack.c.l.b16 %v404
        %v413 = vunpack.c.l.b16 %v405
        %v414 = vunpack.c.l.b16 %v406
        %v415 = vunpack.c.l.b16 %v407
        %v416 = vpack.c.b16 %v413, %v412
        %v417 = vpack.c.b16 %v415, %v414
        %vm418 = vcmask 523264
        %v420 = vsel %vm418, %v416, 0
        %v423 = vsel %vm418, %v417, 0
        %425 = vmatpush.bf16.msra.mxu0 0
        %426 = vmatpush.bf16.msra.mxu0 0
        %427 = vmatpush.bf16.msra.mxu0 0
        %428 = vmatpush.bf16.msra.mxu0 0
        %429 = vmatpush.bf16.msra.mxu0 %v358
        %430 = vmatpush.bf16.msra.mxu0 %v356
        %431 = vmatpush.bf16.msra.mxu0 %v354
        %432 = vmatpush.bf16.msra.mxu0 %v352
        %433 = vmatmul.bf16.gmra.mxu0 %v420
        %v434 = vpop.f32.mrf.mxu0
        %v435 = vadd.f32 0.0, %v434
        %v436 = vpop.f32.mrf.mxu0
        %v437 = vadd.f32 0.0, %v436
        %438 = vmatmul.bf16.gmra.mxu0 %v423
        %v439 = vpop.f32.mrf.mxu0
        %v440 = vadd.f32 0.0, %v439
        %v441 = vpop.f32.mrf.mxu0
        %v442 = vadd.f32 0.0, %v441
        %443 = vdwg.mxu0
        %444 = vmatpush.bf16.msra.mxu0 0
        %445 = vmatpush.bf16.msra.mxu0 0
        %446 = vmatpush.bf16.msra.mxu0 0
        %447 = vmatpush.bf16.msra.mxu0 0
        %448 = vmatpush.bf16.msra.mxu0 %v359
        %449 = vmatpush.bf16.msra.mxu0 %v357
        %450 = vmatpush.bf16.msra.mxu0 %v355
        %451 = vmatpush.bf16.msra.mxu0 %v353
        %452 = vmatmul.bf16.gmra.mxu0 %v420
        %v453 = vpop.f32.mrf.mxu0
        %v454 = vadd.f32 0.0, %v453
        %v455 = vpop.f32.mrf.mxu0
        %v456 = vadd.f32 0.0, %v455
        %457 = vmatmul.bf16.gmra.mxu0 %v423
        %v458 = vpop.f32.mrf.mxu0
        %v459 = vadd.f32 0.0, %v458
        %v460 = vpop.f32.mrf.mxu0
        %v461 = vadd.f32 0.0, %v460
        %462 = vdwg.mxu0
        %v463 = vld [vmem:[#allocation8] sm:$0xf]
        %v464 = vld [vmem:[#allocation8 + $0x4] sm:$0xf]
        %v465 = vld [vmem:[#allocation8 + $0x8] sm:$0xf]
        %v466 = vld [vmem:[#allocation8 + $0xc] sm:$0xf]
        %v471 = vunpack.c.l.b16 %v463
        %v472 = vunpack.c.l.b16 %v464
        %v473 = vunpack.c.l.b16 %v465
        %v474 = vunpack.c.l.b16 %v466
        %v475 = vpack.c.b16 %v472, %v471
        %v476 = vpack.c.b16 %v474, %v473
        %vm477 = vcmask 392192
        %v479 = vsel %vm477, %v475, 0
        %v482 = vsel %vm477, %v476, 0
        %484 = vmatpush.bf16.msra.mxu0 0
        %485 = vmatpush.bf16.msra.mxu0 0
        %486 = vmatpush.bf16.msra.mxu0 0
        %487 = vmatpush.bf16.msra.mxu0 0
        %488 = vmatpush.bf16.msra.mxu0 0
        %489 = vmatpush.bf16.msra.mxu0 %v402
        %490 = vmatpush.bf16.msra.mxu0 %v400
        %491 = vmatpush.bf16.msra.mxu0 %v398
        %492 = vmatmul.bf16.gmra.mxu0 %v479
        %v493 = vpop.f32.mrf.mxu0
        %v494 = vadd.f32 0.0, %v493
        %v495 = vpop.f32.mrf.mxu0
        %v496 = vadd.f32 0.0, %v495
        %497 = vmatmul.bf16.gmra.mxu0 %v482
        %v498 = vpop.f32.mrf.mxu0
        %v499 = vadd.f32 0.0, %v498
        %v500 = vpop.f32.mrf.mxu0
        %v501 = vadd.f32 0.0, %v500
        %502 = vdwg.mxu0
        %503 = vmatpush.bf16.msra.mxu0 0
        %504 = vmatpush.bf16.msra.mxu0 0
        %505 = vmatpush.bf16.msra.mxu0 0
        %506 = vmatpush.bf16.msra.mxu0 0
        %507 = vmatpush.bf16.msra.mxu0 0
        %508 = vmatpush.bf16.msra.mxu0 %v403
        %509 = vmatpush.bf16.msra.mxu0 %v401
        %510 = vmatpush.bf16.msra.mxu0 %v399
        %511 = vmatmul.bf16.gmra.mxu0 %v479
        %v512 = vpop.f32.mrf.mxu0
        %v513 = vadd.f32 0.0, %v512
        %v514 = vpop.f32.mrf.mxu0
        %v515 = vadd.f32 0.0, %v514
        %516 = vmatmul.bf16.gmra.mxu0 %v482
        %v517 = vpop.f32.mrf.mxu0
        %v518 = vadd.f32 0.0, %v517
        %v519 = vpop.f32.mrf.mxu0
        %v520 = vadd.f32 0.0, %v519
        %521 = vdwg.mxu0
        %v522 = vmul.f32 %v435, %v494
        %v523 = vmul.f32 %v454, %v513
        %v524 = vmul.f32 %v437, %v496
        %v525 = vmul.f32 %v456, %v515
        %v526 = vmul.f32 %v440, %v499
        %v527 = vmul.f32 %v459, %v518
        %v528 = vmul.f32 %v442, %v501
        %v529 = vmul.f32 %v461, %v520
        %v530 = vadd.f32 %v522, %v524
        %v531 = vadd.f32 %v530, %v526
        %v532 = vadd.f32 %v531, %v528
        %v533 = vrot.slane %v532, 4
        %v534 = vadd.f32 %v532, %v533
        %v535 = vrot.slane %v534, 2
        %v536 = vadd.f32 %v534, %v535
        %v537 = vrot.slane %v536, 1
        %v538 = vadd.f32 %v536, %v537
        %v539 = vadd.f32 %v523, %v525
        %v540 = vadd.f32 %v539, %v527
        %v541 = vadd.f32 %v540, %v529
        %v542 = vrot.slane %v541, 4
        %v543 = vadd.f32 %v541, %v542
        %v544 = vrot.slane %v543, 2
        %v545 = vadd.f32 %v543, %v544
        %v546 = vrot.slane %v545, 1
        %v547 = vadd.f32 %v545, %v546
        %v550 = vrot.slane %v547, 7
        %vm551 = vcmask 1040384
        %v552 = vsel %vm551, %v538, %v550
        %v554 = vlaneseq
        %vm555 = vcmp.ge.s32.totalorder %v554, 0
        %vm556 = vcmp.lt.s32.totalorder %v554, 256
        %vm557 = vmand %vm555, %vm556
        %558 = vst.msk [vmem:[%s286] sm:$0x3] %vm557, %v552
        %s559 = sand.u32 %s127, 1
        %s560 = scalar_lea.sflag [#allocation4], %s559
        %s561 = sand.u32 %s127, 1
        %s562 = smul.addr %s561, 2
        %s563 = scalar_lea.vmem [#allocation10], %s562
        // Predicated region
        $region53: #{tpu_custom_call.1} parent=35 // pred_check
          %p564 = pneg %p137
        $region54: #{tpu_custom_call.1} parent=35 // pred_check_branch
          %566 = sbr.rel (%p564) target = $region56
        $region55: #{tpu_custom_call.1} parent=35 // pred_region
          %s567 = smul.u32 2, %s25
          %569 = vsyncadd %s560, 0
          %s570 = scalar_lea.hbm %s4, %s567
          %s572 = sshll.u32 %s563, 4
          %s573 = int_to_ptr.vmem [resolvable:$true] %s572
          %s574 = sshll.u32 %s570, 4
          %s575 = int_to_ptr.hbm [resolvable:$true] %s574
          %577 = dma.vmem_to_hbm [thread:$0]  %s573, 32, %s575, %s560
        $region56: #{tpu_custom_call.1} parent=35 // pred_fallthru
          _
      $region36: #{tpu_custom_call.1} parent=5 // pred_fallthru
        _
      %p578 = scmp.le.s32.totalorder 2, %s20
      // Predicated region
      $region57: #{tpu_custom_call.1} parent=5 // pred_check
        %p579 = pneg %p578
      $region58: #{tpu_custom_call.1} parent=5 // pred_check_branch
        %581 = sbr.rel (%p579) target = $region60
      $region59: #{tpu_custom_call.1} parent=5 // pred_region
        %s582 = ssub.s32 %s20, 2
        // Predicated region
        $region61: #{tpu_custom_call.1} parent=59 // pred_check
          %p583 = pneg %p143
        $region62: #{tpu_custom_call.1} parent=59 // pred_check_branch
          %585 = sbr.rel (%p583) target = $region64
        $region63: #{tpu_custom_call.1} parent=59 // pred_region
          %s586 = sand.u32 %s128, 1
          %s587 = scalar_lea.sflag [#allocation4], %s586
          %s588 = sand.u32 %s128, 1
          %s589 = smul.addr %s588, 2
          %s590 = scalar_lea.vmem [#allocation10], %s589
          %592 = dma.done %s587, 32
        $region64: #{tpu_custom_call.1} parent=59 // pred_fallthru
          _
      $region60: #{tpu_custom_call.1} parent=5 // pred_fallthru
        _
    $region6: #{tpu_custom_call.1} parent=1 // loop_footer
      %s24 = sadd.s32 1, %s20
    $region7: #{tpu_custom_call.1} parent=1 // loop_footer_branch
      %19 = sbr.rel target = $region3
    $region8: #{tpu_custom_call.1} parent=1 // loop_exit
      _
    %593 = vsyncpa [#allocation3], 1
    %s594 = scalar_lea.sflag [#allocation3], 1
    %595 = vsyncpa %s594, 1
    %596 = vsyncpa [#allocation6], 1
    %s597 = scalar_lea.sflag [#allocation6], 1
    %598 = vsyncpa %s597, 1
    %599 = vsyncpa [#allocation9], 1
    %600 = vsyncpa [#allocation4], 1
    %s601 = scalar_lea.sflag [#allocation4], 1
    %602 = vsyncpa %s601, 1

</llo_original>
